<compile_context>
chip_gen: v5e
topology: v5e:2x2
jax: 0.10.0
libtpu: 0.0.40
codegen_flags: <defaults>
</compile_context>

<pallas_src>
import functools
import math

import numpy as np
import jax
import jax.numpy as jnp
from jax.experimental import pallas as pl
from jax.experimental.pallas import tpu as pltpu

LANE = 128          # padded feature width = TPU lane count
NUM_LAYERS = 5      # fc1..fc4 + mu head


def make_actor_kernel(max_action):
    max_action = float(max_action)

    def actor_kernel(x_ref, w_ref, b_ref, out_ref):
        # x_ref  : (TB, LANE)               bf16  zero-padded activations
        # w_ref  : (NUM_LAYERS, LANE, LANE) bf16  packed weight slab (zero-padded)
        # b_ref  : (NUM_LAYERS, 1, LANE)    f32   packed bias slab   (zero-padded)
        # out_ref: (TB, LANE)               f32   lane-dense output block
        h = x_ref[...]                                        # bf16
        for layer in range(NUM_LAYERS - 1):
            acc = jnp.dot(h, w_ref[layer],
                          preferred_element_type=jnp.float32)
            # f32 bias-add + relu, then store the streamed activation as bf16:
            # halves vreg/VMEM traffic between layers; padded lanes stay 0.
            h = jnp.maximum(acc + b_ref[layer], 0.0).astype(jnp.bfloat16)
        mu = jnp.dot(h, w_ref[NUM_LAYERS - 1],
                     preferred_element_type=jnp.float32) + b_ref[NUM_LAYERS - 1]
        out_ref[...] = (jnp.tanh(mu) * jnp.float32(max_action)).astype(out_ref.dtype)

    return actor_kernel


def pack_params(params):
    """Pack list of (W [in,out] f32, b [1,out] f32) into zero-padded slabs.

    Done ONCE (host-side numpy, one device transfer per slab) -- not on the
    per-forward path.

    Returns:
      w_slab: [NUM_LAYERS, LANE, LANE] bf16 (padded rows/cols are exact zeros)
      b_slab: [NUM_LAYERS, 1, LANE]    f32  (padded lanes are exact zeros)
    """
    assert len(params) == NUM_LAYERS
    w_slab = np.zeros((NUM_LAYERS, LANE, LANE), np.float32)
    b_slab = np.zeros((NUM_LAYERS, 1, LANE), np.float32)
    for i, (w, b) in enumerate(params):
        w_np = np.asarray(w, np.float32)
        b_np = np.asarray(b, np.float32)
        fi, fo = w_np.shape
        w_slab[i, :fi, :fo] = w_np
        b_slab[i, 0, :fo] = b_np.reshape(fo)
    return jnp.asarray(w_slab, jnp.bfloat16), jnp.asarray(b_slab, jnp.float32)


def _round_up(x, m):
    return ((x + m - 1) // m) * m


@functools.partial(jax.jit,
                   static_argnames=("max_action", "n_actions", "block_batch"))
def actor_forward(state, w_slab, b_slab, *, max_action, n_actions,
                  block_batch=1024):
    """state: [B, input_dims] f32.  w_slab/b_slab: from pack_params (call once)."""
    B, in_dims = state.shape

    # ---- adaptive batch tile ------------------------------------------------
    B8 = _round_up(B, 8)                      # (8,128) sublane/lane tiling rule
    n_tiles = max(1, pl.cdiv(B8, block_batch))
    if B8 >= 16:
        n_tiles = max(n_tiles, 2)             # >=2 grid steps -> both v7x TCs
    TB = _round_up(pl.cdiv(B8, n_tiles), 8)
    B_pad = _round_up(B8, TB)
    grid = B_pad // TB

    # Zero-pad batch rows and feature lanes; pre-cast to bf16 (the MXU input
    # dtype) so the streamed x DMA is half the size.  Padding is exact: padded
    # lanes hit zero weight rows, padded rows are sliced off below.
    x_pad = jnp.zeros((B_pad, LANE), jnp.bfloat16)
    x_pad = x_pad.at[:B, :in_dims].set(state.astype(jnp.bfloat16))

    kernel = make_actor_kernel(max_action)

    flops = 2 * B_pad * LANE * LANE * NUM_LAYERS
    bytes_accessed = (x_pad.size * 2            # bf16 activations in
                      + w_slab.size * 2         # bf16 weight slab
                      + b_slab.size * 4         # f32 bias slab
                      + B_pad * LANE * 4)       # f32 output
    cost = pl.CostEstimate(flops=flops,
                           transcendentals=B_pad * LANE,   # tanh on the head
                           bytes_accessed=bytes_accessed)

    out_padded = pl.pallas_call(
        kernel,
        out_shape=jax.ShapeDtypeStruct((B_pad, LANE), jnp.float32),
        grid=(grid,),
        in_specs=[
            # batch-tiled activations (streamed)
            pl.BlockSpec((TB, LANE), lambda i: (i, 0)),
            # weights/biases: constant index_map -> VMEM-resident across steps
            pl.BlockSpec((NUM_LAYERS, LANE, LANE), lambda i: (0, 0, 0)),
            pl.BlockSpec((NUM_LAYERS, 1, LANE), lambda i: (0, 0, 0)),
        ],
        out_specs=pl.BlockSpec((TB, LANE), lambda i: (i, 0)),
        compiler_params=pltpu.CompilerParams(
            dimension_semantics=("parallel",)),
        cost_estimate=cost,
    )(x_pad, w_slab, b_slab)

    return out_padded[:B, :n_actions]


def init_linear(key, fan_in, fan_out):
    """Deterministic init mimicking torch.nn.Linear default (uniform +-1/sqrt(fan_in))."""
    kw, kb = jax.random.split(key)
    bound = 1.0 / math.sqrt(fan_in)
    w = jax.random.uniform(kw, (fan_in, fan_out), jnp.float32, -bound, bound)
    b = jax.random.uniform(kb, (1, fan_out), jnp.float32, -bound, bound)
    return w, b


def reference_forward_f32(state, params, max_action):
    h = state
    for w, b in params[:-1]:
        h = jnp.maximum(h @ w + b, 0.0)
    wmu, bmu = params[-1]
    return jnp.tanh(h @ wmu + bmu) * max_action


def reference_forward_bf16(state, params, max_action):
    """Same math as the kernel (bf16 MXU inputs / bf16 activations, f32 acc)."""
    h = state.astype(jnp.bfloat16)
    for w, b in params[:-1]:
        acc = jnp.dot(h, w.astype(jnp.bfloat16),
                      preferred_element_type=jnp.float32) + b
        h = jnp.maximum(acc, 0.0).astype(jnp.bfloat16)
    wmu, bmu = params[-1]
    mu = jnp.dot(h, wmu.astype(jnp.bfloat16),
                 preferred_element_type=jnp.float32) + bmu
    return jnp.tanh(mu) * max_action


if __name__ == "__main__":
    # Small shapes consistent with the module's fully-connected forward path.
    batch = 2
    input_dims = 8
    fc1_dims = fc2_dims = fc3_dims = fc4_dims = 32
    n_actions = 4
    max_action = 2.0

    key = jax.random.PRNGKey(0)
    k_state, k1, k2, k3, k4, kmu = jax.random.split(key, 6)

    state = jax.random.normal(k_state, (batch, input_dims), jnp.float32)

    params = [
        init_linear(k1, input_dims, fc1_dims),
        init_linear(k2, fc1_dims, fc2_dims),
        init_linear(k3, fc2_dims, fc3_dims),
        init_linear(k4, fc3_dims, fc4_dims),
        init_linear(kmu, fc4_dims, n_actions),  # mu head
    ]
    # NOTE: fc5/fc6 from __init__ are unused in forward(), so they are omitted.

    # Pack parameter slabs ONCE (hoisted out of the per-call path).
    w_slab, b_slab = pack_params(params)

    out = actor_forward(state, w_slab, b_slab,
                        max_action=max_action, n_actions=n_actions)
    out = jax.block_until_ready(out)

    assert out.shape == (batch, n_actions)

    # Tight check vs a JAX reference doing the identical bf16/f32-acc math.
    ref_bf16 = reference_forward_bf16(state, params, max_action)
    assert jnp.allclose(out, ref_bf16, atol=1e-2, rtol=1e-2), \
        "mismatch vs bf16 reference"

    # Loose check vs the pure-f32 reference (bf16 MXU inputs + bf16 activation
    # storage introduce ~1e-2 relative error).
    ref_f32 = reference_forward_f32(state, params, max_action)
    assert jnp.allclose(out, ref_f32, atol=5e-2, rtol=5e-2), \
        "mismatch vs f32 reference"

    print("KERNEL_OK")
</pallas_src>

<mosaic_0001>
module attributes {stable_mosaic.version = 11 : i64} {
  func.func @actor_kernel(%arg0: i32, %arg1: memref<8x128xbf16, #tpu.memory_space<vmem>>, %arg2: memref<5x128x128xbf16, #tpu.memory_space<vmem>>, %arg3: memref<5x1x128xf32, #tpu.memory_space<vmem>>, %arg4: memref<8x128xf32, #tpu.memory_space<vmem>>) attributes {dimension_semantics = [#tpu.dimension_semantics<parallel>], iteration_bounds = array<i64: 1>, scalar_prefetch = 0 : i64, scratch_operands = 0 : i64, tpu.core_type = #tpu.core_type<tc>, window_params = [{transform_indices = @transform_0, window_bounds = array<i64: 8, 128>}, {pipeline_mode = #tpu.pipeline_mode<synchronous>, transform_indices = @transform_1, window_bounds = array<i64: 5, 128, 128>}, {pipeline_mode = #tpu.pipeline_mode<synchronous>, transform_indices = @transform_2, window_bounds = array<i64: 5, 1, 128>}, {transform_indices = @transform_3, window_bounds = array<i64: 8, 128>}]} {
    %c0 = arith.constant 0 : index
    %c0_0 = arith.constant 0 : index
    %0 = vector.load %arg1[%c0, %c0_0] : memref<8x128xbf16, #tpu.memory_space<vmem>>, vector<8x128xbf16>
    %c0_1 = arith.constant 0 : index
    %c0_2 = arith.constant 0 : index
    %c0_3 = arith.constant 0 : index
    %1 = vector.load %arg2[%c0_1, %c0_2, %c0_3] : memref<5x128x128xbf16, #tpu.memory_space<vmem>>, vector<1x128x128xbf16>
    %2 = vector.shape_cast %1 : vector<1x128x128xbf16> to vector<128x128xbf16>
    %cst = arith.constant dense<0.000000e+00> : vector<8x128xf32>
    %3 = tpu.matmul %0, %2, %cst {dimension_numbers = #tpu.dot_dimension_numbers<[1], [0], [0], [1], [0, 0, 1, 1], [], []>} : vector<8x128xbf16>, vector<128x128xbf16>, vector<8x128xf32> -> vector<8x128xf32>
    %c0_4 = arith.constant 0 : index
    %c0_5 = arith.constant 0 : index
    %c0_6 = arith.constant 0 : index
    %4 = vector.load %arg3[%c0_4, %c0_5, %c0_6] : memref<5x1x128xf32, #tpu.memory_space<vmem>>, vector<1x1x128xf32>
    %5 = vector.shape_cast %4 : vector<1x1x128xf32> to vector<1x128xf32>
    %6 = vector.broadcast %5 : vector<1x128xf32> to vector<8x128xf32>
    %7 = arith.addf %3, %6 : vector<8x128xf32>
    %cst_7 = arith.constant 0.000000e+00 : f32
    %8 = vector.broadcast %cst_7 : f32 to vector<8x128xf32>
    %9 = arith.maximumf %7, %8 : vector<8x128xf32>
    %10 = arith.truncf %9 : vector<8x128xf32> to vector<8x128xbf16>
    %c1 = arith.constant 1 : index
    %c0_8 = arith.constant 0 : index
    %c0_9 = arith.constant 0 : index
    %11 = vector.load %arg2[%c1, %c0_8, %c0_9] : memref<5x128x128xbf16, #tpu.memory_space<vmem>>, vector<1x128x128xbf16>
    %12 = vector.shape_cast %11 : vector<1x128x128xbf16> to vector<128x128xbf16>
    %cst_10 = arith.constant dense<0.000000e+00> : vector<8x128xf32>
    %13 = tpu.matmul %10, %12, %cst_10 {dimension_numbers = #tpu.dot_dimension_numbers<[1], [0], [0], [1], [0, 0, 1, 1], [], []>} : vector<8x128xbf16>, vector<128x128xbf16>, vector<8x128xf32> -> vector<8x128xf32>
    %c1_11 = arith.constant 1 : index
    %c0_12 = arith.constant 0 : index
    %c0_13 = arith.constant 0 : index
    %14 = vector.load %arg3[%c1_11, %c0_12, %c0_13] : memref<5x1x128xf32, #tpu.memory_space<vmem>>, vector<1x1x128xf32>
    %15 = vector.shape_cast %14 : vector<1x1x128xf32> to vector<1x128xf32>
    %16 = vector.broadcast %15 : vector<1x128xf32> to vector<8x128xf32>
    %17 = arith.addf %13, %16 : vector<8x128xf32>
    %cst_14 = arith.constant 0.000000e+00 : f32
    %18 = vector.broadcast %cst_14 : f32 to vector<8x128xf32>
    %19 = arith.maximumf %17, %18 : vector<8x128xf32>
    %20 = arith.truncf %19 : vector<8x128xf32> to vector<8x128xbf16>
    %c2 = arith.constant 2 : index
    %c0_15 = arith.constant 0 : index
    %c0_16 = arith.constant 0 : index
    %21 = vector.load %arg2[%c2, %c0_15, %c0_16] : memref<5x128x128xbf16, #tpu.memory_space<vmem>>, vector<1x128x128xbf16>
    %22 = vector.shape_cast %21 : vector<1x128x128xbf16> to vector<128x128xbf16>
    %cst_17 = arith.constant dense<0.000000e+00> : vector<8x128xf32>
    %23 = tpu.matmul %20, %22, %cst_17 {dimension_numbers = #tpu.dot_dimension_numbers<[1], [0], [0], [1], [0, 0, 1, 1], [], []>} : vector<8x128xbf16>, vector<128x128xbf16>, vector<8x128xf32> -> vector<8x128xf32>
    %c2_18 = arith.constant 2 : index
    %c0_19 = arith.constant 0 : index
    %c0_20 = arith.constant 0 : index
    %24 = vector.load %arg3[%c2_18, %c0_19, %c0_20] : memref<5x1x128xf32, #tpu.memory_space<vmem>>, vector<1x1x128xf32>
    %25 = vector.shape_cast %24 : vector<1x1x128xf32> to vector<1x128xf32>
    %26 = vector.broadcast %25 : vector<1x128xf32> to vector<8x128xf32>
    %27 = arith.addf %23, %26 : vector<8x128xf32>
    %cst_21 = arith.constant 0.000000e+00 : f32
    %28 = vector.broadcast %cst_21 : f32 to vector<8x128xf32>
    %29 = arith.maximumf %27, %28 : vector<8x128xf32>
    %30 = arith.truncf %29 : vector<8x128xf32> to vector<8x128xbf16>
    %c3 = arith.constant 3 : index
    %c0_22 = arith.constant 0 : index
    %c0_23 = arith.constant 0 : index
    %31 = vector.load %arg2[%c3, %c0_22, %c0_23] : memref<5x128x128xbf16, #tpu.memory_space<vmem>>, vector<1x128x128xbf16>
    %32 = vector.shape_cast %31 : vector<1x128x128xbf16> to vector<128x128xbf16>
    %cst_24 = arith.constant dense<0.000000e+00> : vector<8x128xf32>
    %33 = tpu.matmul %30, %32, %cst_24 {dimension_numbers = #tpu.dot_dimension_numbers<[1], [0], [0], [1], [0, 0, 1, 1], [], []>} : vector<8x128xbf16>, vector<128x128xbf16>, vector<8x128xf32> -> vector<8x128xf32>
    %c3_25 = arith.constant 3 : index
    %c0_26 = arith.constant 0 : index
    %c0_27 = arith.constant 0 : index
    %34 = vector.load %arg3[%c3_25, %c0_26, %c0_27] : memref<5x1x128xf32, #tpu.memory_space<vmem>>, vector<1x1x128xf32>
    %35 = vector.shape_cast %34 : vector<1x1x128xf32> to vector<1x128xf32>
    %36 = vector.broadcast %35 : vector<1x128xf32> to vector<8x128xf32>
    %37 = arith.addf %33, %36 : vector<8x128xf32>
    %cst_28 = arith.constant 0.000000e+00 : f32
    %38 = vector.broadcast %cst_28 : f32 to vector<8x128xf32>
    %39 = arith.maximumf %37, %38 : vector<8x128xf32>
    %40 = arith.truncf %39 : vector<8x128xf32> to vector<8x128xbf16>
    %c4 = arith.constant 4 : index
    %c0_29 = arith.constant 0 : index
    %c0_30 = arith.constant 0 : index
    %41 = vector.load %arg2[%c4, %c0_29, %c0_30] : memref<5x128x128xbf16, #tpu.memory_space<vmem>>, vector<1x128x128xbf16>
    %42 = vector.shape_cast %41 : vector<1x128x128xbf16> to vector<128x128xbf16>
    %cst_31 = arith.constant dense<0.000000e+00> : vector<8x128xf32>
    %43 = tpu.matmul %40, %42, %cst_31 {dimension_numbers = #tpu.dot_dimension_numbers<[1], [0], [0], [1], [0, 0, 1, 1], [], []>} : vector<8x128xbf16>, vector<128x128xbf16>, vector<8x128xf32> -> vector<8x128xf32>
    %c4_32 = arith.constant 4 : index
    %c0_33 = arith.constant 0 : index
    %c0_34 = arith.constant 0 : index
    %44 = vector.load %arg3[%c4_32, %c0_33, %c0_34] : memref<5x1x128xf32, #tpu.memory_space<vmem>>, vector<1x1x128xf32>
    %45 = vector.shape_cast %44 : vector<1x1x128xf32> to vector<1x128xf32>
    %46 = vector.broadcast %45 : vector<1x128xf32> to vector<8x128xf32>
    %47 = arith.addf %43, %46 : vector<8x128xf32>
    %48 = math.tanh %47 : vector<8x128xf32>
    %cst_35 = arith.constant 2.000000e+00 : f32
    %49 = vector.broadcast %cst_35 : f32 to vector<8x128xf32>
    %50 = arith.mulf %48, %49 : vector<8x128xf32>
    %c0_36 = arith.constant 0 : index
    %c0_37 = arith.constant 0 : index
    %51 = vector.load %arg4[%c0_36, %c0_37] : memref<8x128xf32, #tpu.memory_space<vmem>>, vector<8x128xf32>
    tpu.vector_store %arg4[%c0_36, %c0_37], %50 {strides = array<i32>} : memref<8x128xf32, #tpu.memory_space<vmem>>, vector<8x128xf32>,
    return
  }
  func.func @transform_0(%arg0: i32) -> (i32, i32) {
    %c0_i32 = arith.constant 0 : i32
    %c0_i32_0 = arith.constant 0 : i32
    return %arg0, %c0_i32 : i32, i32
  }
  func.func @transform_1(%arg0: i32) -> (i32, i32, i32) {
    %c0_i32 = arith.constant 0 : i32
    %c0_i32_0 = arith.constant 0 : i32
    %c0_i32_1 = arith.constant 0 : i32
    %c0_i32_2 = arith.constant 0 : i32
    return %c0_i32, %c0_i32_0, %c0_i32_1 : i32, i32, i32
  }
  func.func @transform_2(%arg0: i32) -> (i32, i32, i32) {
    %c0_i32 = arith.constant 0 : i32
    %c0_i32_0 = arith.constant 0 : i32
    %c0_i32_1 = arith.constant 0 : i32
    %c0_i32_2 = arith.constant 0 : i32
    return %c0_i32, %c0_i32_0, %c0_i32_1 : i32, i32, i32
  }
  func.func @transform_3(%arg0: i32) -> (i32, i32) {
    %c0_i32 = arith.constant 0 : i32
    %c0_i32_0 = arith.constant 0 : i32
    return %arg0, %c0_i32 : i32, i32
  }
}

</mosaic_0001>

<llo_original>
// kernel: actor_forward.1
$region0: #{actor_forward.1}
  #allocation0 [shape = 'u32[]', space=smem, size = 0x4, offset = 0x4, fixed_abs, tag = 'smem constant byte address 0x4 - core index']
  #allocation1 [shape = 'u32[72,128]{1,0:T(1,128)}', space=vmem, size = 0x9000, scoped, tag = 'internal scratch']
  %s0 = inlined_call_operand.vmem [shape: bf16[8,128], index: 0, kind: input, shape index: {}]
  %s1 = inlined_call_operand.hbm [shape: bf16[5,128,128], index: 1, kind: input, shape index: {}]
  %s2 = inlined_call_operand.vmem [shape: f32[5,1,128], index: 2, kind: input, shape index: {}]
  %s3 = inlined_call_operand.vmem [shape: f32[8,128], index: 3, kind: output, shape index: {}]
  %s4 = sld [smem:[#allocation0]]
  $region26: #{actor_forward.1} parent=0
    _
  %s6 = ssub.s32 1, %s4
  %s7 = scalar_select 0, %s6, %s4
  $region1: #{actor_forward.1} parent=0
    #allocation2 [shape = 'u8[163840]{0}', space=vmem, size = 0x28000, scoped, tag = 'input window, operand 1, single buffered']
    #allocation3 [shape = 's32[1]{0}', space=sflag, size = 0x4, scoped, tag = 'scoped memory for actor_forward.1']
    %8 = vsyncpa [#allocation3], 0
    // Predicated region
    $region2: #{actor_forward.1} parent=1 // pred_check
      _
    $region3: #{actor_forward.1} parent=1 // pred_check_branch
      %10 = sbr.rel (0) target = $region5
    $region4: #{actor_forward.1} parent=1 // pred_region
      _
    $region5: #{actor_forward.1} parent=1 // pred_fallthru
      _
    // Predicated region
    $region6: #{actor_forward.1} parent=1 // pred_check
      _
    $region7: #{actor_forward.1} parent=1 // pred_check_branch
      %12 = sbr.rel (0) target = $region9
    $region8: #{actor_forward.1} parent=1 // pred_region
      %14 = vsyncadd [#allocation3], 0
      %s15 = sshll.u32 %s1, 4
      %s16 = int_to_ptr.hbm [resolvable:$true] %s15
      %s17 = sshll.u32 [#allocation2], 4
      %s18 = int_to_ptr.vmem [resolvable:$true] %s17
      %23 = dma.hbm_to_vmem [thread:$0]  %s16, 5120, %s18, [#allocation3], 64, 64, 4
    $region9: #{actor_forward.1} parent=1 // pred_fallthru
      _
    // Predicated region
    $region10: #{actor_forward.1} parent=1 // pred_check
      _
    $region11: #{actor_forward.1} parent=1 // pred_check_branch
      %25 = sbr.rel (0) target = $region13
    $region12: #{actor_forward.1} parent=1 // pred_region
      _
    $region13: #{actor_forward.1} parent=1 // pred_fallthru
      _
    // Predicated region
    $region14: #{actor_forward.1} parent=1 // pred_check
      _
    $region15: #{actor_forward.1} parent=1 // pred_check_branch
      %27 = sbr.rel (0) target = $region17
    $region16: #{actor_forward.1} parent=1 // pred_region
      %29 = dma.done [#allocation3], 5120
    $region17: #{actor_forward.1} parent=1 // pred_fallthru
      _
    %v30 = vld [vmem:[%s0] sm:$0xf]
    %v31 = vld [vmem:[#allocation2] sm:$0xf]
    %v32 = vld [vmem:[#allocation2 + $0x4] sm:$0xf]
    %v33 = vld [vmem:[#allocation2 + $0x8] sm:$0xf]
    %v34 = vld [vmem:[#allocation2 + $0xc] sm:$0xf]
    %v35 = vld [vmem:[#allocation2 + $0x10] sm:$0xf]
    %v36 = vld [vmem:[#allocation2 + $0x14] sm:$0xf]
    %v37 = vld [vmem:[#allocation2 + $0x18] sm:$0xf]
    %v38 = vld [vmem:[#allocation2 + $0x1c] sm:$0xf]
    %v39 = vld [vmem:[#allocation2 + $0x20] sm:$0xf]
    %v40 = vld [vmem:[#allocation2 + $0x24] sm:$0xf]
    %v41 = vld [vmem:[#allocation2 + $0x28] sm:$0xf]
    %v42 = vld [vmem:[#allocation2 + $0x2c] sm:$0xf]
    %v43 = vld [vmem:[#allocation2 + $0x30] sm:$0xf]
    %v44 = vld [vmem:[#allocation2 + $0x34] sm:$0xf]
    %v45 = vld [vmem:[#allocation2 + $0x38] sm:$0xf]
    %v46 = vld [vmem:[#allocation2 + $0x3c] sm:$0xf]
    %v47 = vld [vmem:[%s2] sm:$0x1]
    %v49 = vperm.slane %v47, 0
    %v67 = vunpack.c.l.b16 %v31
    %v68 = vunpack.c.l.b16 %v32
    %v69 = vunpack.c.l.b16 %v33
    %v70 = vunpack.c.l.b16 %v34
    %v71 = vunpack.c.l.b16 %v35
    %v72 = vunpack.c.l.b16 %v36
    %v73 = vunpack.c.l.b16 %v37
    %v74 = vunpack.c.l.b16 %v38
    %v75 = vunpack.c.l.b16 %v39
    %v76 = vunpack.c.l.b16 %v40
    %v77 = vunpack.c.l.b16 %v41
    %v78 = vunpack.c.l.b16 %v42
    %v79 = vunpack.c.l.b16 %v43
    %v80 = vunpack.c.l.b16 %v44
    %v81 = vunpack.c.l.b16 %v45
    %v82 = vunpack.c.l.b16 %v46
    %v83 = vpack.c.b16 %v68, %v67
    %v84 = vpack.c.b16 %v70, %v69
    %v85 = vpack.c.b16 %v72, %v71
    %v86 = vpack.c.b16 %v74, %v73
    %v87 = vpack.c.b16 %v76, %v75
    %v88 = vpack.c.b16 %v78, %v77
    %v89 = vpack.c.b16 %v80, %v79
    %v90 = vpack.c.b16 %v82, %v81
    %99 = vmatpush.bf16.msra.mxu0 %v90
    %100 = vmatpush.bf16.msra.mxu0 %v89
    %101 = vmatpush.bf16.msra.mxu0 %v88
    %102 = vmatpush.bf16.msra.mxu0 %v87
    %103 = vmatpush.bf16.msra.mxu0 %v86
    %104 = vmatpush.bf16.msra.mxu0 %v85
    %105 = vmatpush.bf16.msra.mxu0 %v84
    %106 = vmatpush.bf16.msra.mxu0 %v83
    %107 = vmatmul.bf16.gmra.mxu0 %v30
    %v108 = vpop.f32.mrf.mxu0
    %v109 = vadd.f32 %v49, %v108
    %v110 = vpop.f32.mrf.mxu0
    %111 = vdwg.mxu0
    %v112 = vmax.f32 %v109, 0.0
    %v113 = vpack.c.bf16 %v112, %v112
    %s114 = scalar_lea.vmem [#allocation2], 64
    %v115 = vld [vmem:[%s114] sm:$0xf]
    %v116 = vld [vmem:[%s114 + $0x4] sm:$0xf]
    %v117 = vld [vmem:[%s114 + $0x8] sm:$0xf]
    %v118 = vld [vmem:[%s114 + $0xc] sm:$0xf]
    %v119 = vld [vmem:[%s114 + $0x10] sm:$0xf]
    %v120 = vld [vmem:[%s114 + $0x14] sm:$0xf]
    %v121 = vld [vmem:[%s114 + $0x18] sm:$0xf]
    %v122 = vld [vmem:[%s114 + $0x1c] sm:$0xf]
    %v123 = vld [vmem:[%s114 + $0x20] sm:$0xf]
    %v124 = vld [vmem:[%s114 + $0x24] sm:$0xf]
    %v125 = vld [vmem:[%s114 + $0x28] sm:$0xf]
    %v126 = vld [vmem:[%s114 + $0x2c] sm:$0xf]
    %v127 = vld [vmem:[%s114 + $0x30] sm:$0xf]
    %v128 = vld [vmem:[%s114 + $0x34] sm:$0xf]
    %v129 = vld [vmem:[%s114 + $0x38] sm:$0xf]
    %v130 = vld [vmem:[%s114 + $0x3c] sm:$0xf]
    %s131 = scalar_lea.vmem %s2, 1
    %v132 = vld [vmem:[%s131] sm:$0x1]
    %v134 = vperm.slane %v132, 0
    %v152 = vunpack.c.l.b16 %v115
    %v153 = vunpack.c.l.b16 %v116
    %v154 = vunpack.c.l.b16 %v117
    %v155 = vunpack.c.l.b16 %v118
    %v156 = vunpack.c.l.b16 %v119
    %v157 = vunpack.c.l.b16 %v120
    %v158 = vunpack.c.l.b16 %v121
    %v159 = vunpack.c.l.b16 %v122
    %v160 = vunpack.c.l.b16 %v123
    %v161 = vunpack.c.l.b16 %v124
    %v162 = vunpack.c.l.b16 %v125
    %v163 = vunpack.c.l.b16 %v126
    %v164 = vunpack.c.l.b16 %v127
    %v165 = vunpack.c.l.b16 %v128
    %v166 = vunpack.c.l.b16 %v129
    %v167 = vunpack.c.l.b16 %v130
    %v168 = vpack.c.b16 %v153, %v152
    %v169 = vpack.c.b16 %v155, %v154
    %v170 = vpack.c.b16 %v157, %v156
    %v171 = vpack.c.b16 %v159, %v158
    %v172 = vpack.c.b16 %v161, %v160
    %v173 = vpack.c.b16 %v163, %v162
    %v174 = vpack.c.b16 %v165, %v164
    %v175 = vpack.c.b16 %v167, %v166
    %184 = vmatpush.bf16.msra.mxu0 %v175
    %185 = vmatpush.bf16.msra.mxu0 %v174
    %186 = vmatpush.bf16.msra.mxu0 %v173
    %187 = vmatpush.bf16.msra.mxu0 %v172
    %188 = vmatpush.bf16.msra.mxu0 %v171
    %189 = vmatpush.bf16.msra.mxu0 %v170
    %190 = vmatpush.bf16.msra.mxu0 %v169
    %191 = vmatpush.bf16.msra.mxu0 %v168
    %192 = vmatmul.bf16.gmra.mxu0 %v113
    %v193 = vpop.f32.mrf.mxu0
    %v194 = vadd.f32 %v134, %v193
    %v195 = vpop.f32.mrf.mxu0
    %196 = vdwg.mxu0
    %v197 = vmax.f32 %v194, 0.0
    %v198 = vpack.c.bf16 %v197, %v197
    %s199 = scalar_lea.vmem [#allocation2], 128
    %v200 = vld [vmem:[%s199] sm:$0xf]
    %v201 = vld [vmem:[%s199 + $0x4] sm:$0xf]
    %v202 = vld [vmem:[%s199 + $0x8] sm:$0xf]
    %v203 = vld [vmem:[%s199 + $0xc] sm:$0xf]
    %v204 = vld [vmem:[%s199 + $0x10] sm:$0xf]
    %v205 = vld [vmem:[%s199 + $0x14] sm:$0xf]
    %v206 = vld [vmem:[%s199 + $0x18] sm:$0xf]
    %v207 = vld [vmem:[%s199 + $0x1c] sm:$0xf]
    %v208 = vld [vmem:[%s199 + $0x20] sm:$0xf]
    %v209 = vld [vmem:[%s199 + $0x24] sm:$0xf]
    %v210 = vld [vmem:[%s199 + $0x28] sm:$0xf]
    %v211 = vld [vmem:[%s199 + $0x2c] sm:$0xf]
    %v212 = vld [vmem:[%s199 + $0x30] sm:$0xf]
    %v213 = vld [vmem:[%s199 + $0x34] sm:$0xf]
    %v214 = vld [vmem:[%s199 + $0x38] sm:$0xf]
    %v215 = vld [vmem:[%s199 + $0x3c] sm:$0xf]
    %s216 = scalar_lea.vmem %s2, 2
    %v217 = vld [vmem:[%s216] sm:$0x1]
    %v219 = vperm.slane %v217, 0
    %v237 = vunpack.c.l.b16 %v200
    %v238 = vunpack.c.l.b16 %v201
    %v239 = vunpack.c.l.b16 %v202
    %v240 = vunpack.c.l.b16 %v203
    %v241 = vunpack.c.l.b16 %v204
    %v242 = vunpack.c.l.b16 %v205
    %v243 = vunpack.c.l.b16 %v206
    %v244 = vunpack.c.l.b16 %v207
    %v245 = vunpack.c.l.b16 %v208
    %v246 = vunpack.c.l.b16 %v209
    %v247 = vunpack.c.l.b16 %v210
    %v248 = vunpack.c.l.b16 %v211
    %v249 = vunpack.c.l.b16 %v212
    %v250 = vunpack.c.l.b16 %v213
    %v251 = vunpack.c.l.b16 %v214
    %v252 = vunpack.c.l.b16 %v215
    %v253 = vpack.c.b16 %v238, %v237
    %v254 = vpack.c.b16 %v240, %v239
    %v255 = vpack.c.b16 %v242, %v241
    %v256 = vpack.c.b16 %v244, %v243
    %v257 = vpack.c.b16 %v246, %v245
    %v258 = vpack.c.b16 %v248, %v247
    %v259 = vpack.c.b16 %v250, %v249
    %v260 = vpack.c.b16 %v252, %v251
    %269 = vmatpush.bf16.msra.mxu0 %v260
    %270 = vmatpush.bf16.msra.mxu0 %v259
    %271 = vmatpush.bf16.msra.mxu0 %v258
    %272 = vmatpush.bf16.msra.mxu0 %v257
    %273 = vmatpush.bf16.msra.mxu0 %v256
    %274 = vmatpush.bf16.msra.mxu0 %v255
    %275 = vmatpush.bf16.msra.mxu0 %v254
    %276 = vmatpush.bf16.msra.mxu0 %v253
    %277 = vmatmul.bf16.gmra.mxu0 %v198
    %v278 = vpop.f32.mrf.mxu0
    %v279 = vadd.f32 %v219, %v278
    %v280 = vpop.f32.mrf.mxu0
    %281 = vdwg.mxu0
    %v282 = vmax.f32 %v279, 0.0
    %v283 = vpack.c.bf16 %v282, %v282
    %s284 = scalar_lea.vmem [#allocation2], 192
    %v285 = vld [vmem:[%s284] sm:$0xf]
    %v286 = vld [vmem:[%s284 + $0x4] sm:$0xf]
    %v287 = vld [vmem:[%s284 + $0x8] sm:$0xf]
    %v288 = vld [vmem:[%s284 + $0xc] sm:$0xf]
    %v289 = vld [vmem:[%s284 + $0x10] sm:$0xf]
    %v290 = vld [vmem:[%s284 + $0x14] sm:$0xf]
    %v291 = vld [vmem:[%s284 + $0x18] sm:$0xf]
    %v292 = vld [vmem:[%s284 + $0x1c] sm:$0xf]
    %v293 = vld [vmem:[%s284 + $0x20] sm:$0xf]
    %v294 = vld [vmem:[%s284 + $0x24] sm:$0xf]
    %v295 = vld [vmem:[%s284 + $0x28] sm:$0xf]
    %v296 = vld [vmem:[%s284 + $0x2c] sm:$0xf]
    %v297 = vld [vmem:[%s284 + $0x30] sm:$0xf]
    %v298 = vld [vmem:[%s284 + $0x34] sm:$0xf]
    %v299 = vld [vmem:[%s284 + $0x38] sm:$0xf]
    %v300 = vld [vmem:[%s284 + $0x3c] sm:$0xf]
    %s301 = scalar_lea.vmem %s2, 3
    %v302 = vld [vmem:[%s301] sm:$0x1]
    %v304 = vperm.slane %v302, 0
    %v322 = vunpack.c.l.b16 %v285
    %v323 = vunpack.c.l.b16 %v286
    %v324 = vunpack.c.l.b16 %v287
    %v325 = vunpack.c.l.b16 %v288
    %v326 = vunpack.c.l.b16 %v289
    %v327 = vunpack.c.l.b16 %v290
    %v328 = vunpack.c.l.b16 %v291
    %v329 = vunpack.c.l.b16 %v292
    %v330 = vunpack.c.l.b16 %v293
    %v331 = vunpack.c.l.b16 %v294
    %v332 = vunpack.c.l.b16 %v295
    %v333 = vunpack.c.l.b16 %v296
    %v334 = vunpack.c.l.b16 %v297
    %v335 = vunpack.c.l.b16 %v298
    %v336 = vunpack.c.l.b16 %v299
    %v337 = vunpack.c.l.b16 %v300
    %v338 = vpack.c.b16 %v323, %v322
    %v339 = vpack.c.b16 %v325, %v324
    %v340 = vpack.c.b16 %v327, %v326
    %v341 = vpack.c.b16 %v329, %v328
    %v342 = vpack.c.b16 %v331, %v330
    %v343 = vpack.c.b16 %v333, %v332
    %v344 = vpack.c.b16 %v335, %v334
    %v345 = vpack.c.b16 %v337, %v336
    %354 = vmatpush.bf16.msra.mxu0 %v345
    %355 = vmatpush.bf16.msra.mxu0 %v344
    %356 = vmatpush.bf16.msra.mxu0 %v343
    %357 = vmatpush.bf16.msra.mxu0 %v342
    %358 = vmatpush.bf16.msra.mxu0 %v341
    %359 = vmatpush.bf16.msra.mxu0 %v340
    %360 = vmatpush.bf16.msra.mxu0 %v339
    %361 = vmatpush.bf16.msra.mxu0 %v338
    %362 = vmatmul.bf16.gmra.mxu0 %v283
    %v363 = vpop.f32.mrf.mxu0
    %v364 = vadd.f32 %v304, %v363
    %v365 = vpop.f32.mrf.mxu0
    %366 = vdwg.mxu0
    %v367 = vmax.f32 %v364, 0.0
    %v368 = vpack.c.bf16 %v367, %v367
    %s369 = scalar_lea.vmem [#allocation2], 256
    %v370 = vld [vmem:[%s369] sm:$0xf]
    %v371 = vld [vmem:[%s369 + $0x4] sm:$0xf]
    %v372 = vld [vmem:[%s369 + $0x8] sm:$0xf]
    %v373 = vld [vmem:[%s369 + $0xc] sm:$0xf]
    %v374 = vld [vmem:[%s369 + $0x10] sm:$0xf]
    %v375 = vld [vmem:[%s369 + $0x14] sm:$0xf]
    %v376 = vld [vmem:[%s369 + $0x18] sm:$0xf]
    %v377 = vld [vmem:[%s369 + $0x1c] sm:$0xf]
    %v378 = vld [vmem:[%s369 + $0x20] sm:$0xf]
    %v379 = vld [vmem:[%s369 + $0x24] sm:$0xf]
    %v380 = vld [vmem:[%s369 + $0x28] sm:$0xf]
    %v381 = vld [vmem:[%s369 + $0x2c] sm:$0xf]
    %v382 = vld [vmem:[%s369 + $0x30] sm:$0xf]
    %v383 = vld [vmem:[%s369 + $0x34] sm:$0xf]
    %v384 = vld [vmem:[%s369 + $0x38] sm:$0xf]
    %v385 = vld [vmem:[%s369 + $0x3c] sm:$0xf]
    %s386 = scalar_lea.vmem %s2, 4
    %v387 = vld [vmem:[%s386] sm:$0x1]
    %v389 = vperm.slane %v387, 0
    %v407 = vunpack.c.l.b16 %v370
    %v408 = vunpack.c.l.b16 %v371
    %v409 = vunpack.c.l.b16 %v372
    %v410 = vunpack.c.l.b16 %v373
    %v411 = vunpack.c.l.b16 %v374
    %v412 = vunpack.c.l.b16 %v375
    %v413 = vunpack.c.l.b16 %v376
    %v414 = vunpack.c.l.b16 %v377
    %v415 = vunpack.c.l.b16 %v378
    %v416 = vunpack.c.l.b16 %v379
    %v417 = vunpack.c.l.b16 %v380
    %v418 = vunpack.c.l.b16 %v381
    %v419 = vunpack.c.l.b16 %v382
    %v420 = vunpack.c.l.b16 %v383
    %v421 = vunpack.c.l.b16 %v384
    %v422 = vunpack.c.l.b16 %v385
    %v423 = vpack.c.b16 %v408, %v407
    %v424 = vpack.c.b16 %v410, %v409
    %v425 = vpack.c.b16 %v412, %v411
    %v426 = vpack.c.b16 %v414, %v413
    %v427 = vpack.c.b16 %v416, %v415
    %v428 = vpack.c.b16 %v418, %v417
    %v429 = vpack.c.b16 %v420, %v419
    %v430 = vpack.c.b16 %v422, %v421
    %439 = vmatpush.bf16.msra.mxu0 %v430
    %440 = vmatpush.bf16.msra.mxu0 %v429
    %441 = vmatpush.bf16.msra.mxu0 %v428
    %442 = vmatpush.bf16.msra.mxu0 %v427
    %443 = vmatpush.bf16.msra.mxu0 %v426
    %444 = vmatpush.bf16.msra.mxu0 %v425
    %445 = vmatpush.bf16.msra.mxu0 %v424
    %446 = vmatpush.bf16.msra.mxu0 %v423
    %447 = vmatmul.bf16.gmra.mxu0 %v368
    %v448 = vpop.f32.mrf.mxu0
    %v449 = vadd.f32 %v389, %v448
    %v450 = vpop.f32.mrf.mxu0
    %451 = vdwg.mxu0
    %v452 = vtanh.pop %v449
    %v453 = vmul.f32 %v452, 2.0
    %454 = vst [vmem:[%s3] sm:$0xff] %v453
    // Predicated region
    $region18: #{actor_forward.1} parent=1 // pred_check
      _
    $region19: #{actor_forward.1} parent=1 // pred_check_branch
      %456 = sbr.rel (0) target = $region21
    $region20: #{actor_forward.1} parent=1 // pred_region
      _
    $region21: #{actor_forward.1} parent=1 // pred_fallthru
      _
    // Predicated region
    $region22: #{actor_forward.1} parent=1 // pred_check
      _
    $region23: #{actor_forward.1} parent=1 // pred_check_branch
      %458 = sbr.rel (0) target = $region25
    $region24: #{actor_forward.1} parent=1 // pred_region
      _
    $region25: #{actor_forward.1} parent=1 // pred_fallthru
      _
    %459 = vsyncpa [#allocation3], 1

</llo_original>
